<compile_context>
chip_gen: v7x
topology: tpu7x:2x2x1
jax: 0.10.0
libtpu: 0.0.40
codegen_flags: <defaults>
</compile_context>

<pallas_src>
import functools

import jax
import jax.numpy as jnp
import numpy as np
from jax.experimental import pallas as pl
from jax.experimental.pallas import tpu as pltpu


# ----------------------------------------------------------------------------
# Pallas kernel: one (batch element, time tile) per grid step.
# ----------------------------------------------------------------------------
def wadain_ff_kernel(
    x_ref,      # (C_in, T_TILE)   input tile (batch dim squeezed by BlockSpec)
    c_ref,      # (B, E)           all speaker embeddings, VMEM-resident
    wcat_ref,   # (H+O, 2*C_in)    block-diag merged [conv1 | shortcut] weight
    bcat_ref,   # (H+O, 1)         merged [b1; bsc] bias
    wst_ref,    # (E, H)           WadaIN style affine weight (pre-transposed)
    bs_ref,     # (1, H)           WadaIN style affine bias
    w2_ref,     # (O, H)           WadaIN conv weight (1x1)
    lng_ref,    # (C_in, 1)        LayerNorm gamma
    lnb_ref,    # (C_in, 1)        LayerNorm beta
    o_ref,      # (O, T_TILE)      output tile (batch dim squeezed)
    *, hid,
):
    b = pl.program_id(0)
    x = x_ref[...]                                            # (C_in, Tt)

    # ---- LayerNorm over channels: one-pass stats ----------------------------
    mu = jnp.mean(x, axis=0, keepdims=True)                   # (1, Tt)
    ex2 = jnp.mean(x * x, axis=0, keepdims=True)              # (1, Tt)
    var = ex2 - mu * mu
    xn = (x - mu) * jax.lax.rsqrt(var + 1e-5)
    xn = lng_ref[...] * xn + lnb_ref[...]                     # (C_in, Tt)

    # ---- merged conv1 (1x1) + learned residual shortcut (1x1): one MXU pass -
    xcat = jnp.concatenate([xn, x], axis=0)                   # (2*C_in, Tt)
    hs = jnp.dot(wcat_ref[...], xcat,
                 preferred_element_type=jnp.float32) + bcat_ref[...]
    h = jnp.maximum(hs[:hid], 0.0)                            # (H, Tt), ReLU
    sc = hs[hid:]                                             # (O, Tt)

    # ---- WadaIN for this batch element --------------------------------------
    # (style affine is recomputed per time tile; (1,E)@(E,H) is negligible
    #  next to the modulated conv below)
    c_row = c_ref[pl.ds(b, 1), :]                             # (1, E)
    style = jnp.dot(c_row, wst_ref[...],
                    preferred_element_type=jnp.float32) + bs_ref[...]   # (1, H)
    wmod = w2_ref[...] * style                                # (O, H)
    demod = jax.lax.rsqrt(jnp.sum(wmod * wmod, axis=1, keepdims=True) + 1e-8)
    wd = wmod * demod                                         # (O, H)

    y = jnp.dot(wd, h, preferred_element_type=jnp.float32)    # (O, Tt)
    y = jnp.maximum(y, 0.2 * y)                               # LeakyReLU(0.2)
    o_ref[...] = (y + sc).astype(o_ref.dtype)                 # unmasked store


# ----------------------------------------------------------------------------
# Wrapper: native-layout streaming, no transposes.
# ----------------------------------------------------------------------------
@jax.jit
def wadain_ff_forward(inputs, c_trg, params):
    """inputs: (B, C_in, T) f32, c_trg: (B, E) f32 -> (B, O, T) f32."""
    B, C_in, T = inputs.shape
    H = params["w1"].shape[0]
    O = params["w2"].shape[0]
    E = c_trg.shape[1]

    # Lane-dense time tile (multiple of 128). 512 keeps double-buffered blocks
    # + live intermediates comfortably inside v7x's 64 MiB VMEM even in f32.
    t_tile = 512 if (T % 512 == 0) else T
    nt = T // t_tile

    # Merged block-diagonal conv1 / shortcut weight and bias (built once).
    w_cat = jnp.zeros((H + O, 2 * C_in), jnp.float32)
    w_cat = w_cat.at[:H, :C_in].set(params["w1"])
    w_cat = w_cat.at[H:, C_in:].set(params["wsc"])
    b_cat = jnp.concatenate([params["b1"], params["bsc"]], axis=0)   # (H+O, 1)

    def resident(shape):
        zero_idx = (0,) * len(shape)
        return pl.BlockSpec(shape, lambda b, t: zero_idx)

    flops = (2 * (H + O) * (2 * C_in) + 2 * O * H) * B * T + 2 * H * E * B * nt
    transcendentals = B * T + O * B * nt
    bytes_accessed = 4 * ((C_in + O) * B * T + B * E
                          + (H + O) * (2 * C_in + 1) + (E + 1) * H
                          + O * H + 2 * C_in)

    out = pl.pallas_call(
        functools.partial(wadain_ff_kernel, hid=H),
        out_shape=jax.ShapeDtypeStruct((B, O, T), jnp.float32),
        grid=(B, nt),
        in_specs=[
            pl.BlockSpec((None, C_in, t_tile), lambda b, t: (b, 0, t)),  # x
            resident((B, E)),                                            # c_trg
            resident((H + O, 2 * C_in)),                                 # w_cat
            resident((H + O, 1)),                                        # b_cat
            resident((E, H)),                                            # ws_t
            resident((1, H)),                                            # bs
            resident((O, H)),                                            # w2
            resident((C_in, 1)),                                         # ln_g
            resident((C_in, 1)),                                         # ln_b
        ],
        out_specs=pl.BlockSpec((None, O, t_tile), lambda b, t: (b, 0, t)),
        compiler_params=pltpu.CompilerParams(
            dimension_semantics=("parallel", "parallel"),
            vmem_limit_bytes=32 * 1024 * 1024),
        cost_estimate=pl.CostEstimate(
            flops=int(flops),
            transcendentals=int(transcendentals),
            bytes_accessed=int(bytes_accessed)),
    )(inputs, c_trg, w_cat, b_cat,
      params["ws_t"], params["bs"], params["w2"],
      params["ln_g"], params["ln_b"])
    return out


# ----------------------------------------------------------------------------
# Pure-JAX reference (mirrors the PyTorch forward semantics).
# ----------------------------------------------------------------------------
def wadain_ff_reference(inputs, c_trg, params):
    x = inputs                                              # (B, C_in, T)
    hi = jax.lax.Precision.HIGHEST
    mu = x.mean(axis=1, keepdims=True)
    var = ((x - mu) ** 2).mean(axis=1, keepdims=True)
    xn = (x - mu) / jnp.sqrt(var + 1e-5)
    xn = params["ln_g"][None, :, :] * xn + params["ln_b"][None, :, :]
    h = jnp.einsum("oc,bct->bot", params["w1"], xn, precision=hi)
    h = h + params["b1"][None, :, :]
    h = jnp.maximum(h, 0.0)
    style = jnp.einsum("be,eh->bh", c_trg, params["ws_t"], precision=hi)
    style = style + params["bs"]                            # (B, H)
    wmod = params["w2"][None, :, :] * style[:, None, :]     # (B, O, H)
    demod = jax.lax.rsqrt(jnp.sum(wmod * wmod, axis=2, keepdims=True) + 1e-8)
    wd = wmod * demod
    y = jnp.einsum("boh,bht->bot", wd, h, precision=hi)
    y = jnp.where(y > 0, y, 0.2 * y)
    sc = jnp.einsum("oc,bct->bot", params["wsc"], x, precision=hi)
    sc = sc + params["bsc"][None, :, :]
    return y + sc


# ----------------------------------------------------------------------------
# Deterministic parameter construction (PyTorch-ish init, no checkpoint).
# ----------------------------------------------------------------------------
def make_params(key, dim_in, dim_hid, dim_out, spk_emb_dim):
    ks = jax.random.split(key, 8)
    u = lambda k, shape, fan: jax.random.uniform(
        k, shape, jnp.float32, -1.0 / np.sqrt(fan), 1.0 / np.sqrt(fan))
    return {
        "w1": u(ks[0], (dim_hid, dim_in), dim_in),
        "b1": u(ks[1], (dim_hid, 1), dim_in),
        "ws_t": u(ks[2], (spk_emb_dim, dim_hid), spk_emb_dim),
        "bs": u(ks[3], (1, dim_hid), spk_emb_dim),
        "w2": jax.random.normal(ks[4], (dim_out, dim_hid), jnp.float32),
        "ln_g": jnp.ones((dim_in, 1), jnp.float32),
        "ln_b": jnp.zeros((dim_in, 1), jnp.float32),
        "wsc": u(ks[5], (dim_out, dim_in), dim_in),
        "bsc": u(ks[6], (dim_out, 1), dim_in),
    }


if __name__ == "__main__":
    # Module config: dim_in=16, dim_hid=32, dim_out=24, kernel1=kernel2=1,
    # res=True (learned shortcut since dim_out != dim_in), use_ln=True,
    # use_act2=True, spk_emb_dim=128.
    B, C_IN, C_HID, C_OUT, T, E = 2, 16, 32, 24, 128, 128

    root = jax.random.PRNGKey(0)
    k_x, k_c, k_p = jax.random.split(root, 3)
    inputs = jax.random.normal(k_x, (B, C_IN, T), jnp.float32)
    c_trg = jax.random.normal(k_c, (B, E), jnp.float32)
    params = make_params(k_p, C_IN, C_HID, C_OUT, E)

    out = wadain_ff_forward(inputs, c_trg, params)
    out = jax.block_until_ready(out)

    ref = jax.block_until_ready(wadain_ff_reference(inputs, c_trg, params))
    np.testing.assert_allclose(np.asarray(out), np.asarray(ref),
                               rtol=1e-4, atol=1e-4)
    assert out.shape == (B, C_OUT, T)
    print("KERNEL_OK")
</pallas_src>

<mosaic_0001>
module attributes {stable_mosaic.version = 11 : i64} {
  func.func @wadain_ff_kernel(%arg0: i32, %arg1: i32, %arg2: memref<1x16x128xf32, #tpu.memory_space<vmem>>, %arg3: memref<2x128xf32, #tpu.memory_space<vmem>>, %arg4: memref<56x32xf32, #tpu.memory_space<vmem>>, %arg5: memref<56x1xf32, #tpu.memory_space<vmem>>, %arg6: memref<128x32xf32, #tpu.memory_space<vmem>>, %arg7: memref<1x32xf32, #tpu.memory_space<vmem>>, %arg8: memref<24x32xf32, #tpu.memory_space<vmem>>, %arg9: memref<16x1xf32, #tpu.memory_space<vmem>>, %arg10: memref<16x1xf32, #tpu.memory_space<vmem>>, %arg11: memref<1x24x128xf32, #tpu.memory_space<vmem>>) attributes {dimension_semantics = [#tpu.dimension_semantics<parallel>, #tpu.dimension_semantics<parallel>], iteration_bounds = array<i64: 2, 1>, scalar_prefetch = 0 : i64, scratch_operands = 0 : i64, tpu.core_type = #tpu.core_type<tc>, window_params = [{transform_indices = @transform_0, window_bounds = array<i64: 1, 16, 128>}, {pipeline_mode = #tpu.pipeline_mode<synchronous>, transform_indices = @transform_1, window_bounds = array<i64: 2, 128>}, {pipeline_mode = #tpu.pipeline_mode<synchronous>, transform_indices = @transform_2, window_bounds = array<i64: 56, 32>}, {pipeline_mode = #tpu.pipeline_mode<synchronous>, transform_indices = @transform_3, window_bounds = array<i64: 56, 1>}, {pipeline_mode = #tpu.pipeline_mode<synchronous>, transform_indices = @transform_4, window_bounds = array<i64: 128, 32>}, {pipeline_mode = #tpu.pipeline_mode<synchronous>, transform_indices = @transform_5, window_bounds = array<i64: 1, 32>}, {pipeline_mode = #tpu.pipeline_mode<synchronous>, transform_indices = @transform_6, window_bounds = array<i64: 24, 32>}, {pipeline_mode = #tpu.pipeline_mode<synchronous>, transform_indices = @transform_7, window_bounds = array<i64: 16, 1>}, {pipeline_mode = #tpu.pipeline_mode<synchronous>, transform_indices = @transform_8, window_bounds = array<i64: 16, 1>}, {transform_indices = @transform_9, window_bounds = array<i64: 1, 24, 128>}]} {
    %c0 = arith.constant 0 : index
    %c0_0 = arith.constant 0 : index
    %c0_1 = arith.constant 0 : index
    %0 = vector.load %arg2[%c0, %c0_0, %c0_1] : memref<1x16x128xf32, #tpu.memory_space<vmem>>, vector<1x16x128xf32>
    %1 = vector.shape_cast %0 : vector<1x16x128xf32> to vector<16x128xf32>
    %cst = arith.constant dense<0.000000e+00> : vector<128xf32>
    %2 = vector.multi_reduction <add>, %1, %cst [0] : vector<16x128xf32> to vector<128xf32>
    %3 = vector.shape_cast %2 : vector<128xf32> to vector<1x128xf32>
    %cst_2 = arith.constant 1.600000e+01 : f32
    %4 = vector.broadcast %cst_2 : f32 to vector<1x128xf32>
    %5 = arith.divf %3, %4 : vector<1x128xf32>
    %6 = arith.mulf %1, %1 : vector<16x128xf32>
    %cst_3 = arith.constant dense<0.000000e+00> : vector<128xf32>
    %7 = vector.multi_reduction <add>, %6, %cst_3 [0] : vector<16x128xf32> to vector<128xf32>
    %8 = vector.shape_cast %7 : vector<128xf32> to vector<1x128xf32>
    %cst_4 = arith.constant 1.600000e+01 : f32
    %9 = vector.broadcast %cst_4 : f32 to vector<1x128xf32>
    %10 = arith.divf %8, %9 : vector<1x128xf32>
    %11 = arith.mulf %5, %5 : vector<1x128xf32>
    %12 = arith.subf %10, %11 : vector<1x128xf32>
    %13 = vector.broadcast %5 : vector<1x128xf32> to vector<16x128xf32>
    %14 = arith.subf %1, %13 : vector<16x128xf32>
    %cst_5 = arith.constant 9.99999974E-6 : f32
    %15 = vector.broadcast %cst_5 : f32 to vector<1x128xf32>
    %16 = arith.addf %12, %15 : vector<1x128xf32>
    %17 = math.rsqrt %16 : vector<1x128xf32>
    %18 = vector.broadcast %17 : vector<1x128xf32> to vector<16x128xf32>
    %19 = arith.mulf %14, %18 : vector<16x128xf32>
    %c0_6 = arith.constant 0 : index
    %c0_7 = arith.constant 0 : index
    %20 = vector.load %arg9[%c0_6, %c0_7] : memref<16x1xf32, #tpu.memory_space<vmem>>, vector<16x1xf32>
    %21 = vector.broadcast %20 : vector<16x1xf32> to vector<16x128xf32>
    %22 = arith.mulf %21, %19 : vector<16x128xf32>
    %c0_8 = arith.constant 0 : index
    %c0_9 = arith.constant 0 : index
    %23 = vector.load %arg10[%c0_8, %c0_9] : memref<16x1xf32, #tpu.memory_space<vmem>>, vector<16x1xf32>
    %24 = vector.broadcast %23 : vector<16x1xf32> to vector<16x128xf32>
    %25 = arith.addf %22, %24 : vector<16x128xf32>
    %26 = tpu.concatenate %25, %1 in 0 : vector<16x128xf32>, vector<16x128xf32> -> vector<32x128xf32>
    %c0_10 = arith.constant 0 : index
    %c0_11 = arith.constant 0 : index
    %27 = vector.load %arg4[%c0_10, %c0_11] : memref<56x32xf32, #tpu.memory_space<vmem>>, vector<56x32xf32>
    %cst_12 = arith.constant dense<0.000000e+00> : vector<56x128xf32>
    %28 = tpu.matmul %27, %26, %cst_12 {dimension_numbers = #tpu.dot_dimension_numbers<[1], [0], [0], [1], [0, 0, 1, 1], [], []>} : vector<56x32xf32>, vector<32x128xf32>, vector<56x128xf32> -> vector<56x128xf32>
    %c0_13 = arith.constant 0 : index
    %c0_14 = arith.constant 0 : index
    %29 = vector.load %arg5[%c0_13, %c0_14] : memref<56x1xf32, #tpu.memory_space<vmem>>, vector<56x1xf32>
    %30 = vector.broadcast %29 : vector<56x1xf32> to vector<56x128xf32>
    %31 = arith.addf %28, %30 : vector<56x128xf32>
    %32 = vector.extract_strided_slice %31 {offsets = [0, 0], sizes = [32, 128], strides = [1, 1]} : vector<56x128xf32> to vector<32x128xf32>
    %cst_15 = arith.constant 0.000000e+00 : f32
    %33 = vector.broadcast %cst_15 : f32 to vector<32x128xf32>
    %34 = arith.maximumf %32, %33 : vector<32x128xf32>
    %35 = vector.extract_strided_slice %31 {offsets = [32, 0], sizes = [24, 128], strides = [1, 1]} : vector<56x128xf32> to vector<24x128xf32>
    %36 = arith.index_cast %arg0 : i32 to index
    %c0_16 = arith.constant 0 : index
    %37 = vector.load %arg3[%36, %c0_16] : memref<2x128xf32, #tpu.memory_space<vmem>>, vector<1x128xf32>
    %c0_17 = arith.constant 0 : index
    %c0_18 = arith.constant 0 : index
    %38 = vector.load %arg6[%c0_17, %c0_18] : memref<128x32xf32, #tpu.memory_space<vmem>>, vector<128x32xf32>
    %cst_19 = arith.constant dense<0.000000e+00> : vector<1x32xf32>
    %39 = tpu.matmul %37, %38, %cst_19 {dimension_numbers = #tpu.dot_dimension_numbers<[1], [0], [0], [1], [0, 0, 1, 1], [], []>} : vector<1x128xf32>, vector<128x32xf32>, vector<1x32xf32> -> vector<1x32xf32>
    %c0_20 = arith.constant 0 : index
    %c0_21 = arith.constant 0 : index
    %40 = vector.load %arg7[%c0_20, %c0_21] : memref<1x32xf32, #tpu.memory_space<vmem>>, vector<1x32xf32>
    %41 = arith.addf %39, %40 : vector<1x32xf32>
    %c0_22 = arith.constant 0 : index
    %c0_23 = arith.constant 0 : index
    %42 = vector.load %arg8[%c0_22, %c0_23] : memref<24x32xf32, #tpu.memory_space<vmem>>, vector<24x32xf32>
    %43 = vector.broadcast %41 : vector<1x32xf32> to vector<24x32xf32>
    %44 = arith.mulf %42, %43 : vector<24x32xf32>
    %45 = arith.mulf %44, %44 : vector<24x32xf32>
    %cst_24 = arith.constant dense<0.000000e+00> : vector<24xf32>
    %46 = vector.multi_reduction <add>, %45, %cst_24 [1] : vector<24x32xf32> to vector<24xf32>
    %47 = vector.shape_cast %46 : vector<24xf32> to vector<24x1xf32>
    %cst_25 = arith.constant 9.99999993E-9 : f32
    %48 = vector.broadcast %cst_25 : f32 to vector<24x1xf32>
    %49 = arith.addf %47, %48 : vector<24x1xf32>
    %50 = math.rsqrt %49 : vector<24x1xf32>
    %51 = vector.broadcast %50 : vector<24x1xf32> to vector<24x32xf32>
    %52 = arith.mulf %44, %51 : vector<24x32xf32>
    %cst_26 = arith.constant dense<0.000000e+00> : vector<24x128xf32>
    %53 = tpu.matmul %52, %34, %cst_26 {dimension_numbers = #tpu.dot_dimension_numbers<[1], [0], [0], [1], [0, 0, 1, 1], [], []>} : vector<24x32xf32>, vector<32x128xf32>, vector<24x128xf32> -> vector<24x128xf32>
    %cst_27 = arith.constant 2.000000e-01 : f32
    %54 = vector.broadcast %cst_27 : f32 to vector<24x128xf32>
    %55 = arith.mulf %54, %53 : vector<24x128xf32>
    %56 = arith.maximumf %53, %55 : vector<24x128xf32>
    %57 = arith.addf %56, %35 : vector<24x128xf32>
    %c0_28 = arith.constant 0 : index
    %c0_29 = arith.constant 0 : index
    %c0_30 = arith.constant 0 : index
    %58 = vector.load %arg11[%c0_28, %c0_29, %c0_30] : memref<1x24x128xf32, #tpu.memory_space<vmem>>, vector<1x24x128xf32>
    %59 = vector.shape_cast %58 : vector<1x24x128xf32> to vector<24x128xf32>
    %60 = vector.shape_cast %57 : vector<24x128xf32> to vector<1x24x128xf32>
    tpu.vector_store %arg11[%c0_28, %c0_29, %c0_30], %60 {strides = array<i32>} : memref<1x24x128xf32, #tpu.memory_space<vmem>>, vector<1x24x128xf32>,
    return
  }
  func.func @transform_0(%arg0: i32, %arg1: i32) -> (i32, i32, i32) {
    %c0_i32 = arith.constant 0 : i32
    %c0_i32_0 = arith.constant 0 : i32
    return %arg0, %c0_i32, %arg1 : i32, i32, i32
  }
  func.func @transform_1(%arg0: i32, %arg1: i32) -> (i32, i32) {
    %c0_i32 = arith.constant 0 : i32
    %c0_i32_0 = arith.constant 0 : i32
    %c0_i32_1 = arith.constant 0 : i32
    return %c0_i32, %c0_i32_0 : i32, i32
  }
  func.func @transform_2(%arg0: i32, %arg1: i32) -> (i32, i32) {
    %c0_i32 = arith.constant 0 : i32
    %c0_i32_0 = arith.constant 0 : i32
    %c0_i32_1 = arith.constant 0 : i32
    return %c0_i32, %c0_i32_0 : i32, i32
  }
  func.func @transform_3(%arg0: i32, %arg1: i32) -> (i32, i32) {
    %c0_i32 = arith.constant 0 : i32
    %c0_i32_0 = arith.constant 0 : i32
    %c0_i32_1 = arith.constant 0 : i32
    return %c0_i32, %c0_i32_0 : i32, i32
  }
  func.func @transform_4(%arg0: i32, %arg1: i32) -> (i32, i32) {
    %c0_i32 = arith.constant 0 : i32
    %c0_i32_0 = arith.constant 0 : i32
    %c0_i32_1 = arith.constant 0 : i32
    return %c0_i32, %c0_i32_0 : i32, i32
  }
  func.func @transform_5(%arg0: i32, %arg1: i32) -> (i32, i32) {
    %c0_i32 = arith.constant 0 : i32
    %c0_i32_0 = arith.constant 0 : i32
    %c0_i32_1 = arith.constant 0 : i32
    return %c0_i32, %c0_i32_0 : i32, i32
  }
  func.func @transform_6(%arg0: i32, %arg1: i32) -> (i32, i32) {
    %c0_i32 = arith.constant 0 : i32
    %c0_i32_0 = arith.constant 0 : i32
    %c0_i32_1 = arith.constant 0 : i32
    return %c0_i32, %c0_i32_0 : i32, i32
  }
  func.func @transform_7(%arg0: i32, %arg1: i32) -> (i32, i32) {
    %c0_i32 = arith.constant 0 : i32
    %c0_i32_0 = arith.constant 0 : i32
    %c0_i32_1 = arith.constant 0 : i32
    return %c0_i32, %c0_i32_0 : i32, i32
  }
  func.func @transform_8(%arg0: i32, %arg1: i32) -> (i32, i32) {
    %c0_i32 = arith.constant 0 : i32
    %c0_i32_0 = arith.constant 0 : i32
    %c0_i32_1 = arith.constant 0 : i32
    return %c0_i32, %c0_i32_0 : i32, i32
  }
  func.func @transform_9(%arg0: i32, %arg1: i32) -> (i32, i32, i32) {
    %c0_i32 = arith.constant 0 : i32
    %c0_i32_0 = arith.constant 0 : i32
    return %arg0, %c0_i32, %arg1 : i32, i32, i32
  }
}

</mosaic_0001>

<llo_original>
// kernel: wadain_ff_forward.1
$region0: #{wadain_ff_forward.1}
  #allocation0 [shape = 'u32[]', space=smem, size = 0x4, offset = 0x4, fixed_abs, tag = 'smem constant byte address 0x4 - core index']
  #allocation1 [shape = 'u32[144,128]{1,0:T(1,128)}', space=vmem, size = 0x12000, scoped, tag = 'internal scratch']
  %s0 = inlined_call_operand.vmem [shape: f32[2,16,128], index: 0, kind: input, shape index: {}]
  %s1 = inlined_call_operand.vmem [shape: f32[2,128], index: 1, kind: input, shape index: {}]
  %s2 = inlined_call_operand.vmem [shape: f32[56,32], index: 2, kind: input, shape index: {}]
  %s3 = inlined_call_operand.vmem [shape: f32[56,1], index: 3, kind: input, shape index: {}]
  %s4 = inlined_call_operand.vmem [shape: f32[128,32], index: 4, kind: input, shape index: {}]
  %s5 = inlined_call_operand.vmem [shape: f32[1,32], index: 5, kind: input, shape index: {}]
  %s6 = inlined_call_operand.vmem [shape: f32[24,32], index: 6, kind: input, shape index: {}]
  %s7 = inlined_call_operand.vmem [shape: f32[16,1], index: 7, kind: input, shape index: {}]
  %s8 = inlined_call_operand.vmem [shape: f32[16,1], index: 8, kind: input, shape index: {}]
  %s9 = inlined_call_operand.hbm [shape: f32[2,24,128], index: 9, kind: output, shape index: {}]
  %s10 = sld [smem:[#allocation0]]
  $region69: #{wadain_ff_forward.1} parent=0
    _
  %s12 = ssub.s32 1, %s10
  %s13 = scalar_select 0, %s12, %s10
  $region1: #{wadain_ff_forward.1} parent=0
    #allocation2 [shape = 'u8[24576]{0}', space=vmem, size = 0x6000, scoped, tag = 'output window, operand 0']
    #allocation3 [shape = 's32[2]{0}', space=sflag, size = 0x8, scoped, tag = 'scoped memory for wadain_ff_forward.1']
    %14 = vsyncpa [#allocation3], 0
    %s15 = scalar_lea.sflag [#allocation3], 1
    %16 = vsyncpa %s15, 0
    loop: start=0, step=1, limit=4
    $region2: #{wadain_ff_forward.1} parent=1 // loop_pre_header
      _
    $region3: #{wadain_ff_forward.1} parent=1 // loop_header
      %s18 = sphi 0, %s22
      %p19 = scmp.ge.s32.totalorder %s18, 4
      %s25 = sphi 0, %s37
      %s26 = sphi 0, %s33
      %s27 = sphi 0, %s25
      %s28 = sphi 0, %s26
      %s29 = sphi 0, %s27
      %s30 = sphi 0, %s28
      %s42 = sphi 0, %s44
      %s45 = sphi 0, %s42
      %s46 = sphi 0, %s45
      %s62 = sphi 0, %s46
      %s66 = sphi 0, %s66
      %s68 = sphi 0, %s66
      %s69 = sphi 0, %s68
      %s83 = sphi 0, %s69
      %s87 = sphi 0, %s87
      %s89 = sphi 0, %s87
      %s90 = sphi 0, %s89
      %s104 = sphi 0, %s90
      %s108 = sphi 0, %s108
      %s110 = sphi 0, %s108
      %s111 = sphi 0, %s110
      %s125 = sphi 0, %s111
      %s129 = sphi 0, %s129
      %s131 = sphi 0, %s129
      %s132 = sphi 0, %s131
      %s146 = sphi 0, %s132
      %s150 = sphi 0, %s150
      %s152 = sphi 0, %s150
      %s153 = sphi 0, %s152
      %s167 = sphi 0, %s153
      %s171 = sphi 0, %s171
      %s173 = sphi 0, %s171
      %s174 = sphi 0, %s173
      %s188 = sphi 0, %s174
      %s192 = sphi 0, %s192
      %s194 = sphi 0, %s192
      %s195 = sphi 0, %s194
      %s209 = sphi 0, %s195
      %s213 = sphi 0, %s213
      %s215 = sphi 0, %s213
      %s216 = sphi 0, %s215
      %s230 = sphi 0, %s216
      %s238 = sphi 0, %s240
      %s241 = sphi 0, %s238
      %s242 = sphi 0, %s241
      %s258 = sphi 0, %s242
    $region4: #{wadain_ff_forward.1} parent=1 // loop_header_branch
      %21 = sbr.rel (%p19) target = $region8
    $region5: #{wadain_ff_forward.1} parent=1 // loop_body
      %s23 = ssub.s32 %s18, 1
      %s24 = ssub.s32 %s18, 2
      %s31 = sadd.s32 1, %s26
      %p32 = scmp.ge.s32.totalorder %s31, 1
      %s33 = scalar_select %p32, 0, %s31
      %s34 = sadd.s32 1, %s25
      %s35 = scalar_select %p32, %s34, %s25
      %p36 = scmp.ge.s32.totalorder %s35, 2
      %s37 = scalar_select %p36, 0, %s35
      %s38 = ssub.s32 %s25, %s37
      %s39 = ssub.s32 %s26, %s33
      %s40 = sor.u32 %s38, %s39
      %p41 = scmp.eq.s32.totalorder %s40, 0
      %s43 = sadd.s32 %s42, 1
      %s44 = scalar_select %p41, %s42, %s43
      %p47 = pneg %p41
      %p48 = scmp.eq.s32.totalorder %s18, 1
      %p49 = por %p47, %p48
      %p50 = scmp.ne.s32.totalorder %s42, %s45
      %p51 = scmp.eq.s32.totalorder %s18, 0
      %p52 = por %p50, %p51
      %p53 = scmp.ne.s32.totalorder %s42, %s45
      %p54 = scmp.eq.s32.totalorder %s23, 1
      %p55 = por %p53, %p54
      %p56 = scmp.ne.s32.totalorder %s45, %s46
      %p57 = scmp.eq.s32.totalorder %s23, 0
      %p58 = por %p56, %p57
      %p59 = scmp.ne.s32.totalorder %s45, %s46
      %p60 = scmp.eq.s32.totalorder %s24, 1
      %p61 = por %p59, %p60
      %p63 = scmp.ne.s32.totalorder %s46, %s62
      %p64 = scmp.eq.s32.totalorder %s24, 0
      %p65 = por %p63, %p64
      %s67 = sadd.s32 %s66, 1
      %p70 = scmp.eq.s32.totalorder %s18, 1
      %p71 = scmp.ne.s32.totalorder %s66, %s68
      %p72 = scmp.eq.s32.totalorder %s18, 0
      %p73 = por %p71, %p72
      %p74 = scmp.ne.s32.totalorder %s66, %s68
      %p75 = scmp.eq.s32.totalorder %s23, 1
      %p76 = por %p74, %p75
      %p77 = scmp.ne.s32.totalorder %s68, %s69
      %p78 = scmp.eq.s32.totalorder %s23, 0
      %p79 = por %p77, %p78
      %p80 = scmp.ne.s32.totalorder %s68, %s69
      %p81 = scmp.eq.s32.totalorder %s24, 1
      %p82 = por %p80, %p81
      %p84 = scmp.ne.s32.totalorder %s69, %s83
      %p85 = scmp.eq.s32.totalorder %s24, 0
      %p86 = por %p84, %p85
      %s88 = sadd.s32 %s87, 1
      %p91 = scmp.eq.s32.totalorder %s18, 1
      %p92 = scmp.ne.s32.totalorder %s87, %s89
      %p93 = scmp.eq.s32.totalorder %s18, 0
      %p94 = por %p92, %p93
      %p95 = scmp.ne.s32.totalorder %s87, %s89
      %p96 = scmp.eq.s32.totalorder %s23, 1
      %p97 = por %p95, %p96
      %p98 = scmp.ne.s32.totalorder %s89, %s90
      %p99 = scmp.eq.s32.totalorder %s23, 0
      %p100 = por %p98, %p99
      %p101 = scmp.ne.s32.totalorder %s89, %s90
      %p102 = scmp.eq.s32.totalorder %s24, 1
      %p103 = por %p101, %p102
      %p105 = scmp.ne.s32.totalorder %s90, %s104
      %p106 = scmp.eq.s32.totalorder %s24, 0
      %p107 = por %p105, %p106
      %s109 = sadd.s32 %s108, 1
      %p112 = scmp.eq.s32.totalorder %s18, 1
      %p113 = scmp.ne.s32.totalorder %s108, %s110
      %p114 = scmp.eq.s32.totalorder %s18, 0
      %p115 = por %p113, %p114
      %p116 = scmp.ne.s32.totalorder %s108, %s110
      %p117 = scmp.eq.s32.totalorder %s23, 1
      %p118 = por %p116, %p117
      %p119 = scmp.ne.s32.totalorder %s110, %s111
      %p120 = scmp.eq.s32.totalorder %s23, 0
      %p121 = por %p119, %p120
      %p122 = scmp.ne.s32.totalorder %s110, %s111
      %p123 = scmp.eq.s32.totalorder %s24, 1
      %p124 = por %p122, %p123
      %p126 = scmp.ne.s32.totalorder %s111, %s125
      %p127 = scmp.eq.s32.totalorder %s24, 0
      %p128 = por %p126, %p127
      %s130 = sadd.s32 %s129, 1
      %p133 = scmp.eq.s32.totalorder %s18, 1
      %p134 = scmp.ne.s32.totalorder %s129, %s131
      %p135 = scmp.eq.s32.totalorder %s18, 0
      %p136 = por %p134, %p135
      %p137 = scmp.ne.s32.totalorder %s129, %s131
      %p138 = scmp.eq.s32.totalorder %s23, 1
      %p139 = por %p137, %p138
      %p140 = scmp.ne.s32.totalorder %s131, %s132
      %p141 = scmp.eq.s32.totalorder %s23, 0
      %p142 = por %p140, %p141
      %p143 = scmp.ne.s32.totalorder %s131, %s132
      %p144 = scmp.eq.s32.totalorder %s24, 1
      %p145 = por %p143, %p144
      %p147 = scmp.ne.s32.totalorder %s132, %s146
      %p148 = scmp.eq.s32.totalorder %s24, 0
      %p149 = por %p147, %p148
      %s151 = sadd.s32 %s150, 1
      %p154 = scmp.eq.s32.totalorder %s18, 1
      %p155 = scmp.ne.s32.totalorder %s150, %s152
      %p156 = scmp.eq.s32.totalorder %s18, 0
      %p157 = por %p155, %p156
      %p158 = scmp.ne.s32.totalorder %s150, %s152
      %p159 = scmp.eq.s32.totalorder %s23, 1
      %p160 = por %p158, %p159
      %p161 = scmp.ne.s32.totalorder %s152, %s153
      %p162 = scmp.eq.s32.totalorder %s23, 0
      %p163 = por %p161, %p162
      %p164 = scmp.ne.s32.totalorder %s152, %s153
      %p165 = scmp.eq.s32.totalorder %s24, 1
      %p166 = por %p164, %p165
      %p168 = scmp.ne.s32.totalorder %s153, %s167
      %p169 = scmp.eq.s32.totalorder %s24, 0
      %p170 = por %p168, %p169
      %s172 = sadd.s32 %s171, 1
      %p175 = scmp.eq.s32.totalorder %s18, 1
      %p176 = scmp.ne.s32.totalorder %s171, %s173
      %p177 = scmp.eq.s32.totalorder %s18, 0
      %p178 = por %p176, %p177
      %p179 = scmp.ne.s32.totalorder %s171, %s173
      %p180 = scmp.eq.s32.totalorder %s23, 1
      %p181 = por %p179, %p180
      %p182 = scmp.ne.s32.totalorder %s173, %s174
      %p183 = scmp.eq.s32.totalorder %s23, 0
      %p184 = por %p182, %p183
      %p185 = scmp.ne.s32.totalorder %s173, %s174
      %p186 = scmp.eq.s32.totalorder %s24, 1
      %p187 = por %p185, %p186
      %p189 = scmp.ne.s32.totalorder %s174, %s188
      %p190 = scmp.eq.s32.totalorder %s24, 0
      %p191 = por %p189, %p190
      %s193 = sadd.s32 %s192, 1
      %p196 = scmp.eq.s32.totalorder %s18, 1
      %p197 = scmp.ne.s32.totalorder %s192, %s194
      %p198 = scmp.eq.s32.totalorder %s18, 0
      %p199 = por %p197, %p198
      %p200 = scmp.ne.s32.totalorder %s192, %s194
      %p201 = scmp.eq.s32.totalorder %s23, 1
      %p202 = por %p200, %p201
      %p203 = scmp.ne.s32.totalorder %s194, %s195
      %p204 = scmp.eq.s32.totalorder %s23, 0
      %p205 = por %p203, %p204
      %p206 = scmp.ne.s32.totalorder %s194, %s195
      %p207 = scmp.eq.s32.totalorder %s24, 1
      %p208 = por %p206, %p207
      %p210 = scmp.ne.s32.totalorder %s195, %s209
      %p211 = scmp.eq.s32.totalorder %s24, 0
      %p212 = por %p210, %p211
      %s214 = sadd.s32 %s213, 1
      %p217 = scmp.eq.s32.totalorder %s18, 1
      %p218 = scmp.ne.s32.totalorder %s213, %s215
      %p219 = scmp.eq.s32.totalorder %s18, 0
      %p220 = por %p218, %p219
      %p221 = scmp.ne.s32.totalorder %s213, %s215
      %p222 = scmp.eq.s32.totalorder %s23, 1
      %p223 = por %p221, %p222
      %p224 = scmp.ne.s32.totalorder %s215, %s216
      %p225 = scmp.eq.s32.totalorder %s23, 0
      %p226 = por %p224, %p225
      %p227 = scmp.ne.s32.totalorder %s215, %s216
      %p228 = scmp.eq.s32.totalorder %s24, 1
      %p229 = por %p227, %p228
      %p231 = scmp.ne.s32.totalorder %s216, %s230
      %p232 = scmp.eq.s32.totalorder %s24, 0
      %p233 = por %p231, %p232
      %s234 = ssub.s32 %s25, %s37
      %s235 = ssub.s32 %s26, %s33
      %s236 = sor.u32 %s234, %s235
      %p237 = scmp.eq.s32.totalorder %s236, 0
      %s239 = sadd.s32 %s238, 1
      %s240 = scalar_select %p237, %s238, %s239
      %p243 = pneg %p237
      %p244 = scmp.eq.s32.totalorder %s18, 1
      %p245 = por %p243, %p244
      %p246 = scmp.ne.s32.totalorder %s238, %s241
      %p247 = scmp.eq.s32.totalorder %s18, 0
      %p248 = por %p246, %p247
      %p249 = scmp.ne.s32.totalorder %s238, %s241
      %p250 = scmp.eq.s32.totalorder %s23, 1
      %p251 = por %p249, %p250
      %p252 = scmp.ne.s32.totalorder %s241, %s242
      %p253 = scmp.eq.s32.totalorder %s23, 0
      %p254 = por %p252, %p253
      %p255 = scmp.ne.s32.totalorder %s241, %s242
      %p256 = scmp.eq.s32.totalorder %s24, 1
      %p257 = por %p255, %p256
      %p259 = scmp.ne.s32.totalorder %s242, %s258
      %p260 = scmp.eq.s32.totalorder %s24, 0
      %p261 = por %p259, %p260
      %p262 = scmp.le.s32.totalorder 1, %s18
      %p263 = scmp.lt.s32.totalorder %s18, 3
      %p264 = pnand %p262, %p263
      %p265 = pneg %p264
      // Predicated region
      $region9: #{wadain_ff_forward.1} parent=5 // pred_check
        _
      $region10: #{wadain_ff_forward.1} parent=5 // pred_check_branch
        %267 = sbr.rel (%p264) target = $region12
      $region11: #{wadain_ff_forward.1} parent=5 // pred_region
        %s268 = ssub.s32 %s18, 1
        // Predicated region
        $region13: #{wadain_ff_forward.1} parent=11 // pred_check
          %p269 = pneg %p79
        $region14: #{wadain_ff_forward.1} parent=11 // pred_check_branch
          %271 = sbr.rel (%p269) target = $region16
        $region15: #{wadain_ff_forward.1} parent=11 // pred_region
          _
        $region16: #{wadain_ff_forward.1} parent=11 // pred_fallthru
          _
        // Predicated region
        $region17: #{wadain_ff_forward.1} parent=11 // pred_check
          %p272 = pneg %p100
        $region18: #{wadain_ff_forward.1} parent=11 // pred_check_branch
          %274 = sbr.rel (%p272) target = $region20
        $region19: #{wadain_ff_forward.1} parent=11 // pred_region
          _
        $region20: #{wadain_ff_forward.1} parent=11 // pred_fallthru
          _
        // Predicated region
        $region21: #{wadain_ff_forward.1} parent=11 // pred_check
          %p275 = pneg %p121
        $region22: #{wadain_ff_forward.1} parent=11 // pred_check_branch
          %277 = sbr.rel (%p275) target = $region24
        $region23: #{wadain_ff_forward.1} parent=11 // pred_region
          _
        $region24: #{wadain_ff_forward.1} parent=11 // pred_fallthru
          _
        // Predicated region
        $region25: #{wadain_ff_forward.1} parent=11 // pred_check
          %p278 = pneg %p142
        $region26: #{wadain_ff_forward.1} parent=11 // pred_check_branch
          %280 = sbr.rel (%p278) target = $region28
        $region27: #{wadain_ff_forward.1} parent=11 // pred_region
          _
        $region28: #{wadain_ff_forward.1} parent=11 // pred_fallthru
          _
        // Predicated region
        $region29: #{wadain_ff_forward.1} parent=11 // pred_check
          %p281 = pneg %p163
        $region30: #{wadain_ff_forward.1} parent=11 // pred_check_branch
          %283 = sbr.rel (%p281) target = $region32
        $region31: #{wadain_ff_forward.1} parent=11 // pred_region
          _
        $region32: #{wadain_ff_forward.1} parent=11 // pred_fallthru
          _
        // Predicated region
        $region33: #{wadain_ff_forward.1} parent=11 // pred_check
          %p284 = pneg %p184
        $region34: #{wadain_ff_forward.1} parent=11 // pred_check_branch
          %286 = sbr.rel (%p284) target = $region36
        $region35: #{wadain_ff_forward.1} parent=11 // pred_region
          _
        $region36: #{wadain_ff_forward.1} parent=11 // pred_fallthru
          _
        // Predicated region
        $region37: #{wadain_ff_forward.1} parent=11 // pred_check
          %p287 = pneg %p205
        $region38: #{wadain_ff_forward.1} parent=11 // pred_check_branch
          %289 = sbr.rel (%p287) target = $region40
        $region39: #{wadain_ff_forward.1} parent=11 // pred_region
          _
        $region40: #{wadain_ff_forward.1} parent=11 // pred_fallthru
          _
        // Predicated region
        $region41: #{wadain_ff_forward.1} parent=11 // pred_check
          %p290 = pneg %p226
        $region42: #{wadain_ff_forward.1} parent=11 // pred_check_branch
          %292 = sbr.rel (%p290) target = $region44
        $region43: #{wadain_ff_forward.1} parent=11 // pred_region
          _
        $region44: #{wadain_ff_forward.1} parent=11 // pred_fallthru
          _
      $region12: #{wadain_ff_forward.1} parent=5 // pred_fallthru
        _
      %p293 = scmp.lt.s32.totalorder %s18, 2
      // Predicated region
      $region45: #{wadain_ff_forward.1} parent=5 // pred_check
        %p294 = pneg %p293
      $region46: #{wadain_ff_forward.1} parent=5 // pred_check_branch
        %296 = sbr.rel (%p294) target = $region48
      $region47: #{wadain_ff_forward.1} parent=5 // pred_region
        // Predicated region
        $region49: #{wadain_ff_forward.1} parent=47 // pred_check
          %p297 = pneg %p52
        $region50: #{wadain_ff_forward.1} parent=47 // pred_check_branch
          %299 = sbr.rel (%p297) target = $region52
        $region51: #{wadain_ff_forward.1} parent=47 // pred_region
          %p300 = scmp.lt.s32.totalorder %s25, 1
          %s301 = scalar_select %p300, %s25, 1
          %p302 = scmp.lt.s32.totalorder %s26, 0
          %s303 = scalar_select %p302, %s26, 0
          %s304 = smul.addr %s301, 2
          %s305 = sadd.s32 %s303, %s304
          %s306 = smul.addr %s305, 8
          %s307 = scalar_lea.vmem %s0, %s306
        $region52: #{wadain_ff_forward.1} parent=47 // pred_fallthru
          _
      $region48: #{wadain_ff_forward.1} parent=5 // pred_fallthru
        _
      %p308 = scmp.le.s32.totalorder 1, %s18
      %p309 = scmp.lt.s32.totalorder %s18, 3
      %p310 = pnand %p308, %p309
      %p311 = pneg %p310
      // Predicated region
      $region53: #{wadain_ff_forward.1} parent=5 // pred_check
        _
      $region54: #{wadain_ff_forward.1} parent=5 // pred_check_branch
        %313 = sbr.rel (%p310) target = $region56
      $region55: #{wadain_ff_forward.1} parent=5 // pred_region
        %s314 = ssub.s32 %s18, 1
        %p315 = scmp.lt.s32.totalorder %s27, 1
        %s316 = scalar_select %p315, %s27, 1
        %p317 = scmp.lt.s32.totalorder %s28, 0
        %s318 = scalar_select %p317, %s28, 0
        %s319 = smul.addr %s316, 2
        %s320 = sadd.s32 %s318, %s319
        %s321 = smul.addr %s320, 8
        %s322 = scalar_lea.vmem %s0, %s321
        %p323 = pneg %p58
        %p324 = pneg %p55
        %p325 = pneg %p79
        %p326 = pneg %p76
        %p327 = pneg %p100
        %p328 = pneg %p97
        %p329 = pneg %p121
        %p330 = pneg %p118
        %p331 = pneg %p142
        %p332 = pneg %p139
        %p333 = pneg %p163
        %p334 = pneg %p160
        %p335 = pneg %p184
        %p336 = pneg %p181
        %p337 = pneg %p205
        %p338 = pneg %p202
        %p339 = pneg %p226
        %p340 = pneg %p223
        %p341 = pneg %p254
        %p342 = pneg %p251
        %s343 = sand.u32 %s241, 1
        %s344 = scalar_lea.sflag [#allocation3], %s343
        %s345 = sand.u32 %s241, 1
        %s346 = smul.addr %s345, 24
        %s347 = scalar_lea.vmem [#allocation2], %s346
        %p348 = scmp.lt.s32.totalorder %s27, 1
        %s349 = scalar_select %p348, %s27, 1
        %p350 = scmp.lt.s32.totalorder %s28, 0
        %s351 = scalar_select %p350, %s28, 0
        %s352 = smul.addr %s349, 2
        %s353 = sadd.s32 %s351, %s352
        %s354 = smul.addr %s353, 8
        %s355 = scalar_lea.vmem %s0, %s354
        %v356 = vld [vmem:[%s355] sm:$0xff]
        %v357 = vld [vmem:[%s355 + $0x8] sm:$0xff]
        %v358 = vadd.f32 %v356, %v357
        %v359 = vrot.slane %v358, 4
        %v360 = vadd.f32 %v358, %v359
        %v361 = vrot.slane %v360, 2
        %v362 = vadd.f32 %v360, %v361
        %v363 = vrot.slane %v362, 1
        %v364 = vadd.f32 %v362, %v363
        %v365 = vrcp.pop 16.0
        %v366 = vmul.f32 %v364, %v365
        %v367 = vmul.f32 %v356, %v356
        %v368 = vmul.f32 %v357, %v357
        %v369 = vadd.f32 %v367, %v368
        %v370 = vrot.slane %v369, 4
        %v371 = vadd.f32 %v369, %v370
        %v372 = vrot.slane %v371, 2
        %v373 = vadd.f32 %v371, %v372
        %v374 = vrot.slane %v373, 1
        %v375 = vadd.f32 %v373, %v374
        %v376 = vmul.f32 %v375, %v365
        %v377 = vmul.f32 %v366, %v366
        %v378 = vsub.f32 %v376, %v377
        %v379 = vsub.f32 %v356, %v366
        %v380 = vsub.f32 %v357, %v366
        %v381 = vadd.f32 %v378, 1e-05
        %v382 = vrsqrt.pop %v381
        %v383 = vmul.f32 %v379, %v382
        %v384 = vmul.f32 %v380, %v382
        %v385 = vld [vmem:[%s7] sm:$0xff]
        %v386 = vld [vmem:[%s7 + $0x8] sm:$0xff]
        %388 = vset.pattern.permute.xlu0 0
        %389 = vperm.xlu0 %388, %v385
        %v390 = vpop.permute.xlu0 %389
        %393 = vset.pattern.permute.xlu0 0
        %394 = vperm.xlu0 %393, %v386
        %v395 = vpop.permute.xlu0 %394
        %v397 = vmul.f32 %v390, %v383
        %v398 = vmul.f32 %v395, %v384
        %v399 = vld [vmem:[%s8] sm:$0xff]
        %v400 = vld [vmem:[%s8 + $0x8] sm:$0xff]
        %402 = vset.pattern.permute.xlu0 0
        %403 = vperm.xlu0 %402, %v399
        %v404 = vpop.permute.xlu0 %403
        %407 = vset.pattern.permute.xlu0 0
        %408 = vperm.xlu0 %407, %v400
        %v409 = vpop.permute.xlu0 %408
        %v411 = vadd.f32 %v397, %v404
        %v412 = vadd.f32 %v398, %v409
        %v413 = vld [vmem:[%s2] sm:$0xff]
        %v414 = vld [vmem:[%s2 + $0x8] sm:$0xff]
        %v415 = vld [vmem:[%s2 + $0x10] sm:$0xff]
        %v416 = vld [vmem:[%s2 + $0x18] sm:$0xff]
        %v417 = vld [vmem:[%s2 + $0x20] sm:$0xff]
        %v418 = vld [vmem:[%s2 + $0x28] sm:$0xff]
        %v419 = vld [vmem:[%s2 + $0x30] sm:$0xff]
        %v420 = vld [vmem:[%s3] sm:$0xff]
        %v421 = vld [vmem:[%s3 + $0x8] sm:$0xff]
        %v422 = vld [vmem:[%s3 + $0x10] sm:$0xff]
        %v423 = vld [vmem:[%s3 + $0x18] sm:$0xff]
        %v424 = vld [vmem:[%s3 + $0x20] sm:$0xff]
        %v425 = vld [vmem:[%s3 + $0x28] sm:$0xff]
        %v426 = vld [vmem:[%s3 + $0x30] sm:$0xff]
        %428 = vset.pattern.permute.xlu0 0
        %429 = vperm.xlu0 %428, %v420
        %v430 = vpop.permute.xlu0 %429
        %433 = vset.pattern.permute.xlu0 0
        %434 = vperm.xlu0 %433, %v421
        %v435 = vpop.permute.xlu0 %434
        %438 = vset.pattern.permute.xlu0 0
        %439 = vperm.xlu0 %438, %v422
        %v440 = vpop.permute.xlu0 %439
        %443 = vset.pattern.permute.xlu0 0
        %444 = vperm.xlu0 %443, %v423
        %v445 = vpop.permute.xlu0 %444
        %448 = vset.pattern.permute.xlu0 0
        %449 = vperm.xlu0 %448, %v424
        %v450 = vpop.permute.xlu0 %449
        %453 = vset.pattern.permute.xlu0 0
        %454 = vperm.xlu0 %453, %v425
        %v455 = vpop.permute.xlu0 %454
        %458 = vset.pattern.permute.xlu0 0
        %459 = vperm.xlu0 %458, %v426
        %v460 = vpop.permute.xlu0 %459
        %vm462 = vcmask 261120
        %v464 = vsel %vm462, %v413, 0
        %v467 = vsel %vm462, %v414, 0
        %v470 = vsel %vm462, %v415, 0
        %v473 = vsel %vm462, %v416, 0
        %v476 = vsel %vm462, %v417, 0
        %v479 = vsel %vm462, %v418, 0
        %v482 = vsel %vm462, %v419, 0
        %484 = vmatprep.subr.mxu0 0.0
        %485 = vmatpush1.msra.mxu0 %v411
        %486 = vmatprep.subr.mxu0 0.0
        %487 = vmatpush1.msra.mxu0 %v412
        %488 = vmatprep.subr.mxu0 0.0
        %489 = vmatpush1.msra.mxu0 %v356
        %490 = vmatprep.subr.mxu0 0.0
        %491 = vmatpush1.msra.mxu0 %v357
        %492 = vmatprep.subr.mxu0 0.0
        %493 = vmatpush1.msra.mxu0 0.0
        %494 = vmatprep.subr.mxu0 0.0
        %495 = vmatpush1.msra.mxu0 0.0
        %496 = vmatprep.subr.mxu0 0.0
        %497 = vmatpush1.msra.mxu0 0.0
        %498 = vmatprep.subr.mxu0 0.0
        %499 = vmatpush1.msra.mxu0 0.0
        %500 = vmatprep.subr.mxu0 0.0
        %501 = vmatpush1.msra.mxu0 0.0
        %502 = vmatprep.subr.mxu0 0.0
        %503 = vmatpush1.msra.mxu0 0.0
        %504 = vmatprep.subr.mxu0 0.0
        %505 = vmatpush1.msra.mxu0 0.0
        %506 = vmatprep.subr.mxu0 0.0
        %507 = vmatpush1.msra.mxu0 0.0
        %508 = vmatprep.subr.mxu0 0.0
        %509 = vmatpush1.msra.mxu0 0.0
        %510 = vmatprep.subr.mxu0 0.0
        %511 = vmatpush1.msra.mxu0 0.0
        %512 = vmatprep.subr.mxu0 0.0
        %513 = vmatpush1.msra.mxu0 0.0
        %514 = vmatprep.subr.mxu0 0.0
        %515 = vmatpush1.msra.mxu0 0.0
        %516 = vmatprep.subr.mxu0 0.0
        %517 = vmatpush1.msra.mxu0 0.0
        %518 = vmatprep.subr.mxu0 0.0
        %519 = vmatpush1.msra.mxu0 0.0
        %520 = vmatprep.subr.mxu0 0.0
        %521 = vmatpush1.msra.mxu0 0.0
        %522 = vmatprep.subr.mxu0 0.0
        %523 = vmatpush1.msra.mxu0 0.0
        %524 = vmatprep.subr.mxu0 0.0
        %525 = vmatpush1.msra.mxu0 0.0
        %526 = vmatprep.subr.mxu0 0.0
        %527 = vmatpush1.msra.mxu0 0.0
        %528 = vmatprep.subr.mxu0 0.0
        %529 = vmatpush1.msra.mxu0 0.0
        %530 = vmatprep.subr.mxu0 0.0
        %531 = vmatpush1.msra.mxu0 0.0
        %532 = vmatprep.subr.mxu0 0.0
        %533 = vmatpush1.msra.mxu0 0.0
        %534 = vmatprep.subr.mxu0 0.0
        %535 = vmatpush1.msra.mxu0 0.0
        %536 = vmatprep.subr.mxu0 0.0
        %537 = vmatpush1.msra.mxu0 0.0
        %538 = vmatprep.subr.mxu0 0.0
        %539 = vmatpush1.msra.mxu0 0.0
        %540 = vmatprep.subr.mxu0 0.0
        %541 = vmatpush1.msra.mxu0 0.0
        %542 = vmatprep.subr.mxu0 0.0
        %543 = vmatpush1.msra.mxu0 0.0
        %544 = vmatprep.subr.mxu0 0.0
        %545 = vmatpush1.msra.mxu0 0.0
        %546 = vmatprep.subr.mxu0 0.0
        %547 = vmatpush1.msra.mxu0 0.0
        %548 = vmatprep.mubr.f32.mxu0 0.0
        %549 = vmatmul.mubr.f32.gmra.mrb[0].mxu0 %v464
        %v550 = vpop.f32.mrb[0].mxu0
        %v551 = vadd.f32 %v430, %v550
        %v552 = vpop.f32.mrb[0].mxu0
        %553 = vmatprep.mubr.f32.mxu0 0.0
        %554 = vmatmul.mubr.f32.gmra.mrb[0].mxu0 %v467
        %v555 = vpop.f32.mrb[0].mxu0
        %v556 = vadd.f32 %v435, %v555
        %v557 = vpop.f32.mrb[0].mxu0
        %558 = vmatprep.mubr.f32.mxu0 0.0
        %559 = vmatmul.mubr.f32.gmra.mrb[0].mxu0 %v470
        %v560 = vpop.f32.mrb[0].mxu0
        %v561 = vadd.f32 %v440, %v560
        %v562 = vpop.f32.mrb[0].mxu0
        %563 = vmatprep.mubr.f32.mxu0 0.0
        %564 = vmatmul.mubr.f32.gmra.mrb[0].mxu0 %v473
        %v565 = vpop.f32.mrb[0].mxu0
        %v566 = vadd.f32 %v445, %v565
        %v567 = vpop.f32.mrb[0].mxu0
        %568 = vmatprep.mubr.f32.mxu0 0.0
        %569 = vmatmul.mubr.f32.gmra.mrb[0].mxu0 %v476
        %v570 = vpop.f32.mrb[0].mxu0
        %v571 = vadd.f32 %v450, %v570
        %v572 = vpop.f32.mrb[0].mxu0
        %573 = vmatprep.mubr.f32.mxu0 0.0
        %574 = vmatmul.mubr.f32.gmra.mrb[0].mxu0 %v479
        %v575 = vpop.f32.mrb[0].mxu0
        %v576 = vadd.f32 %v455, %v575
        %v577 = vpop.f32.mrb[0].mxu0
        %578 = vmatprep.mubr.f32.mxu0 0.0
        %579 = vmatmul.mubr.f32.gmra.mrb[0].mxu0 %v482
        %v580 = vpop.f32.mrb[0].mxu0
        %v581 = vadd.f32 %v460, %v580
        %v582 = vpop.f32.mrb[0].mxu0
        %583 = vdwg.mxu0
        %v584 = vmax.f32 %v551, 0.0
        %v585 = vmax.f32 %v556, 0.0
        %v586 = vmax.f32 %v561, 0.0
        %v587 = vmax.f32 %v566, 0.0
        %s588 = scalar_lea.vmem %s1, %s27
        %v589 = vld [vmem:[%s588] sm:$0x1]
        %v590 = vld [vmem:[%s4] sm:$0xff]
        %v591 = vld [vmem:[%s4 + $0x8] sm:$0xff]
        %v592 = vld [vmem:[%s4 + $0x10] sm:$0xff]
        %v593 = vld [vmem:[%s4 + $0x18] sm:$0xff]
        %v594 = vld [vmem:[%s4 + $0x20] sm:$0xff]
        %v595 = vld [vmem:[%s4 + $0x28] sm:$0xff]
        %v596 = vld [vmem:[%s4 + $0x30] sm:$0xff]
        %v597 = vld [vmem:[%s4 + $0x38] sm:$0xff]
        %v598 = vld [vmem:[%s4 + $0x40] sm:$0xff]
        %v599 = vld [vmem:[%s4 + $0x48] sm:$0xff]
        %v600 = vld [vmem:[%s4 + $0x50] sm:$0xff]
        %v601 = vld [vmem:[%s4 + $0x58] sm:$0xff]
        %v602 = vld [vmem:[%s4 + $0x60] sm:$0xff]
        %v603 = vld [vmem:[%s4 + $0x68] sm:$0xff]
        %v604 = vld [vmem:[%s4 + $0x70] sm:$0xff]
        %v605 = vld [vmem:[%s4 + $0x78] sm:$0xff]
        %v606 = vld [vmem:[%s5] sm:$0x1]
        %607 = vmatprep.subr.mxu0 0.0
        %608 = vmatpush1.msra.mxu0 %v590
        %609 = vmatprep.subr.mxu0 0.0
        %610 = vmatpush1.msra.mxu0 %v591
        %611 = vmatprep.subr.mxu0 0.0
        %612 = vmatpush1.msra.mxu0 %v592
        %613 = vmatprep.subr.mxu0 0.0
        %614 = vmatpush1.msra.mxu0 %v593
        %615 = vmatprep.subr.mxu0 0.0
        %616 = vmatpush1.msra.mxu0 %v594
        %617 = vmatprep.subr.mxu0 0.0
        %618 = vmatpush1.msra.mxu0 %v595
        %619 = vmatprep.subr.mxu0 0.0
        %620 = vmatpush1.msra.mxu0 %v596
        %621 = vmatprep.subr.mxu0 0.0
        %622 = vmatpush1.msra.mxu0 %v597
        %623 = vmatprep.subr.mxu0 0.0
        %624 = vmatpush1.msra.mxu0 %v598
        %625 = vmatprep.subr.mxu0 0.0
        %626 = vmatpush1.msra.mxu0 %v599
        %627 = vmatprep.subr.mxu0 0.0
        %628 = vmatpush1.msra.mxu0 %v600
        %629 = vmatprep.subr.mxu0 0.0
        %630 = vmatpush1.msra.mxu0 %v601
        %631 = vmatprep.subr.mxu0 0.0
        %632 = vmatpush1.msra.mxu0 %v602
        %633 = vmatprep.subr.mxu0 0.0
        %634 = vmatpush1.msra.mxu0 %v603
        %635 = vmatprep.subr.mxu0 0.0
        %636 = vmatpush1.msra.mxu0 %v604
        %637 = vmatprep.subr.mxu0 0.0
        %638 = vmatpush1.msra.mxu0 %v605
        %639 = vmatprep.subr.mxu0 0.0
        %640 = vmatpush1.msra.mxu0 0.0
        %641 = vmatprep.subr.mxu0 0.0
        %642 = vmatpush1.msra.mxu0 0.0
        %643 = vmatprep.subr.mxu0 0.0
        %644 = vmatpush1.msra.mxu0 0.0
        %645 = vmatprep.subr.mxu0 0.0
        %646 = vmatpush1.msra.mxu0 0.0
        %647 = vmatprep.subr.mxu0 0.0
        %648 = vmatpush1.msra.mxu0 0.0
        %649 = vmatprep.subr.mxu0 0.0
        %650 = vmatpush1.msra.mxu0 0.0
        %651 = vmatprep.subr.mxu0 0.0
        %652 = vmatpush1.msra.mxu0 0.0
        %653 = vmatprep.subr.mxu0 0.0
        %654 = vmatpush1.msra.mxu0 0.0
        %655 = vmatprep.subr.mxu0 0.0
        %656 = vmatpush1.msra.mxu0 0.0
        %657 = vmatprep.subr.mxu0 0.0
        %658 = vmatpush1.msra.mxu0 0.0
        %659 = vmatprep.subr.mxu0 0.0
        %660 = vmatpush1.msra.mxu0 0.0
        %661 = vmatprep.subr.mxu0 0.0
        %662 = vmatpush1.msra.mxu0 0.0
        %663 = vmatprep.subr.mxu0 0.0
        %664 = vmatpush1.msra.mxu0 0.0
        %665 = vmatprep.subr.mxu0 0.0
        %666 = vmatpush1.msra.mxu0 0.0
        %667 = vmatprep.subr.mxu0 0.0
        %668 = vmatpush1.msra.mxu0 0.0
        %669 = vmatprep.subr.mxu0 0.0
        %670 = vmatpush1.msra.mxu0 0.0
        %671 = vmatprep.mubr.f32.mxu0 0.0
        %672 = vmatmul.mubr.f32.gmra.mrb[0].mxu0 %v589
        %v673 = vpop.f32.mrb[0].mxu0
        %v674 = vadd.f32 %v606, %v673
        %v675 = vpop.f32.mrb[0].mxu0
        %676 = vdwg.mxu0
        %v677 = vld [vmem:[%s6] sm:$0xff]
        %v678 = vld [vmem:[%s6 + $0x8] sm:$0xff]
        %v679 = vld [vmem:[%s6 + $0x10] sm:$0xff]
        %v680 = vlaneseq
        %v681 = vshrl.u32 %v680, 7
        %v682 = vsub.s32 0, %v681
        %v683 = vrot.slane %v674, %v682
        %v684 = vmul.f32 %v677, %v683
        %v685 = vmul.f32 %v678, %v683
        %v686 = vmul.f32 %v679, %v683
        %v687 = vmul.f32 %v684, %v684
        %v688 = vmul.f32 %v685, %v685
        %v689 = vmul.f32 %v686, %v686
        %v690 = vsel %vm462, %v687, 0.0
        %691 = vadd.xlane.f32.xlu0 %v690
        %v692 = vpop.xlane.xlu0 %691
        %v693 = vsel %vm462, %v688, 0.0
        %694 = vadd.xlane.f32.xlu0 %v693
        %v695 = vpop.xlane.xlu0 %694
        %v696 = vsel %vm462, %v689, 0.0
        %697 = vadd.xlane.f32.xlu0 %v696
        %v698 = vpop.xlane.xlu0 %697
        %v699 = vadd.f32 %v692, 1e-08
        %v700 = vadd.f32 %v695, 1e-08
        %v701 = vadd.f32 %v698, 1e-08
        %v702 = vrsqrt.pop %v699
        %v703 = vrsqrt.pop %v700
        %v704 = vrsqrt.pop %v701
        %v705 = vmul.f32 %v684, %v702
        %v706 = vmul.f32 %v685, %v703
        %v707 = vmul.f32 %v686, %v704
        %v709 = vsel %vm462, %v705, 0
        %v712 = vsel %vm462, %v706, 0
        %v715 = vsel %vm462, %v707, 0
        %717 = vmatprep.subr.mxu0 0.0
        %718 = vmatpush1.msra.mxu0 %v584
        %719 = vmatprep.subr.mxu0 0.0
        %720 = vmatpush1.msra.mxu0 %v585
        %721 = vmatprep.subr.mxu0 0.0
        %722 = vmatpush1.msra.mxu0 %v586
        %723 = vmatprep.subr.mxu0 0.0
        %724 = vmatpush1.msra.mxu0 %v587
        %725 = vmatprep.subr.mxu0 0.0
        %726 = vmatpush1.msra.mxu0 0.0
        %727 = vmatprep.subr.mxu0 0.0
        %728 = vmatpush1.msra.mxu0 0.0
        %729 = vmatprep.subr.mxu0 0.0
        %730 = vmatpush1.msra.mxu0 0.0
        %731 = vmatprep.subr.mxu0 0.0
        %732 = vmatpush1.msra.mxu0 0.0
        %733 = vmatprep.subr.mxu0 0.0
        %734 = vmatpush1.msra.mxu0 0.0
        %735 = vmatprep.subr.mxu0 0.0
        %736 = vmatpush1.msra.mxu0 0.0
        %737 = vmatprep.subr.mxu0 0.0
        %738 = vmatpush1.msra.mxu0 0.0
        %739 = vmatprep.subr.mxu0 0.0
        %740 = vmatpush1.msra.mxu0 0.0
        %741 = vmatprep.subr.mxu0 0.0
        %742 = vmatpush1.msra.mxu0 0.0
        %743 = vmatprep.subr.mxu0 0.0
        %744 = vmatpush1.msra.mxu0 0.0
        %745 = vmatprep.subr.mxu0 0.0
        %746 = vmatpush1.msra.mxu0 0.0
        %747 = vmatprep.subr.mxu0 0.0
        %748 = vmatpush1.msra.mxu0 0.0
        %749 = vmatprep.subr.mxu0 0.0
        %750 = vmatpush1.msra.mxu0 0.0
        %751 = vmatprep.subr.mxu0 0.0
        %752 = vmatpush1.msra.mxu0 0.0
        %753 = vmatprep.subr.mxu0 0.0
        %754 = vmatpush1.msra.mxu0 0.0
        %755 = vmatprep.subr.mxu0 0.0
        %756 = vmatpush1.msra.mxu0 0.0
        %757 = vmatprep.subr.mxu0 0.0
        %758 = vmatpush1.msra.mxu0 0.0
        %759 = vmatprep.subr.mxu0 0.0
        %760 = vmatpush1.msra.mxu0 0.0
        %761 = vmatprep.subr.mxu0 0.0
        %762 = vmatpush1.msra.mxu0 0.0
        %763 = vmatprep.subr.mxu0 0.0
        %764 = vmatpush1.msra.mxu0 0.0
        %765 = vmatprep.subr.mxu0 0.0
        %766 = vmatpush1.msra.mxu0 0.0
        %767 = vmatprep.subr.mxu0 0.0
        %768 = vmatpush1.msra.mxu0 0.0
        %769 = vmatprep.subr.mxu0 0.0
        %770 = vmatpush1.msra.mxu0 0.0
        %771 = vmatprep.subr.mxu0 0.0
        %772 = vmatpush1.msra.mxu0 0.0
        %773 = vmatprep.subr.mxu0 0.0
        %774 = vmatpush1.msra.mxu0 0.0
        %775 = vmatprep.subr.mxu0 0.0
        %776 = vmatpush1.msra.mxu0 0.0
        %777 = vmatprep.subr.mxu0 0.0
        %778 = vmatpush1.msra.mxu0 0.0
        %779 = vmatprep.subr.mxu0 0.0
        %780 = vmatpush1.msra.mxu0 0.0
        %781 = vmatprep.mubr.f32.mxu0 0.0
        %782 = vmatmul.mubr.f32.gmra.mrb[0].mxu0 %v709
        %v783 = vpop.f32.mrb[0].mxu0
        %v784 = vadd.f32 0.0, %v783
        %v785 = vpop.f32.mrb[0].mxu0
        %786 = vmatprep.mubr.f32.mxu0 0.0
        %787 = vmatmul.mubr.f32.gmra.mrb[0].mxu0 %v712
        %v788 = vpop.f32.mrb[0].mxu0
        %v789 = vadd.f32 0.0, %v788
        %v790 = vpop.f32.mrb[0].mxu0
        %791 = vmatprep.mubr.f32.mxu0 0.0
        %792 = vmatmul.mubr.f32.gmra.mrb[0].mxu0 %v715
        %v793 = vpop.f32.mrb[0].mxu0
        %v794 = vadd.f32 0.0, %v793
        %v795 = vpop.f32.mrb[0].mxu0
        %796 = vdwg.mxu0
        %v797 = vmul.f32 %v784, 0.2
        %v798 = vmul.f32 %v789, 0.2
        %v799 = vmul.f32 %v794, 0.2
        %v800 = vmax.f32 %v784, %v797
        %v801 = vmax.f32 %v789, %v798
        %v802 = vmax.f32 %v794, %v799
        %v803 = vadd.f32 %v800, %v571
        %v804 = vadd.f32 %v801, %v576
        %v805 = vadd.f32 %v802, %v581
        %806 = vst [vmem:[%s347] sm:$0xff] %v803
        %807 = vst [vmem:[%s347 + $0x8] sm:$0xff] %v804
        %808 = vst [vmem:[%s347 + $0x10] sm:$0xff] %v805
        %s809 = sand.u32 %s241, 1
        %s810 = scalar_lea.sflag [#allocation3], %s809
        %s811 = sand.u32 %s241, 1
        %s812 = smul.addr %s811, 24
        %s813 = scalar_lea.vmem [#allocation2], %s812
        // Predicated region
        $region57: #{wadain_ff_forward.1} parent=55 // pred_check
          %p814 = pneg %p251
        $region58: #{wadain_ff_forward.1} parent=55 // pred_check_branch
          %816 = sbr.rel (%p814) target = $region60
        $region59: #{wadain_ff_forward.1} parent=55 // pred_region
          %s818 = ssub.s32 384, 384
          %819 = vsyncadd %s810, %s818
          %s820 = smul.addr %s27, 3
          %s821 = sadd.s32 %s28, %s820
          %s822 = smul.addr %s821, 128
          %s823 = scalar_lea.hbm %s9, %s822
          %s824 = sshll.u32 %s813, 4
          %s825 = int_to_ptr.vmem [resolvable:$true] %s824
          %830 = dma.vmem_to_hbm [thread:$0]  %s825, 384, %s823, %s810, 128, 128, 8
        $region60: #{wadain_ff_forward.1} parent=55 // pred_fallthru
          _
      $region56: #{wadain_ff_forward.1} parent=5 // pred_fallthru
        _
      %p831 = scmp.le.s32.totalorder 2, %s18
      // Predicated region
      $region61: #{wadain_ff_forward.1} parent=5 // pred_check
        %p832 = pneg %p831
      $region62: #{wadain_ff_forward.1} parent=5 // pred_check_branch
        %834 = sbr.rel (%p832) target = $region64
      $region63: #{wadain_ff_forward.1} parent=5 // pred_region
        %s835 = ssub.s32 %s18, 2
        // Predicated region
        $region65: #{wadain_ff_forward.1} parent=63 // pred_check
          %p836 = pneg %p257
        $region66: #{wadain_ff_forward.1} parent=63 // pred_check_branch
          %838 = sbr.rel (%p836) target = $region68
        $region67: #{wadain_ff_forward.1} parent=63 // pred_region
          %s839 = sand.u32 %s242, 1
          %s840 = scalar_lea.sflag [#allocation3], %s839
          %s841 = sand.u32 %s242, 1
          %s842 = smul.addr %s841, 24
          %s843 = scalar_lea.vmem [#allocation2], %s842
          %844 = dma.done %s840, 384
        $region68: #{wadain_ff_forward.1} parent=63 // pred_fallthru
          _
      $region64: #{wadain_ff_forward.1} parent=5 // pred_fallthru
        _
    $region6: #{wadain_ff_forward.1} parent=1 // loop_footer
      %s22 = sadd.s32 1, %s18
    $region7: #{wadain_ff_forward.1} parent=1 // loop_footer_branch
      %17 = sbr.rel target = $region3
    $region8: #{wadain_ff_forward.1} parent=1 // loop_exit
      _
    %845 = vsyncpa [#allocation3], 1
    %s846 = scalar_lea.sflag [#allocation3], 1
    %847 = vsyncpa %s846, 1

</llo_original>
